<compile_context>
chip_gen: v6e
topology: v6e:2x2x1
jax: 0.10.0
libtpu: 0.0.40
codegen_flags: <defaults>
</compile_context>

<pallas_src>
import functools

import jax
import jax.numpy as jnp
from jax import lax
from jax.experimental import pallas as pl
from jax.experimental.pallas import tpu as pltpu


def _round_up(n, m):
    return (n + m - 1) // m * m


def _pick_tile(s, candidates):
    for t in candidates:
        if t <= s and s % t == 0:
            return t
    return s


def _vmem_capacity_bytes():
    try:
        return int(pltpu.get_tpu_info().vmem_capacity_bytes)
    except Exception:
        return 64 << 20   # conservative fallback (v7x per-core VMEM)


def _make_kernel(seq_len, seq_pad):
    mask_keys = seq_pad > seq_len   # static: only trace the mask when S was padded

    def kernel(xq_ref, xkv_ref, wq_ref, bq_ref, wkv_ref, bkv_ref, o_ref,
               q_sc, k_sc, v_sc, m_sc, l_sc, acc_sc):
        j = pl.program_id(1)            # q-tile index
        kk = pl.program_id(2)           # kv-tile index
        nk = pl.num_programs(2)
        d = wq_ref.shape[0]             # padded feature dim
        tk = xkv_ref.shape[1]
        row = pl.multiple_of(kk * tk, tk)

        # --- K/V projection, chunked: one TK-row block per grid step, executed only
        # while j == 0 (once per batch element), written into resident VMEM scratch.
        @pl.when(j == 0)
        def _():
            kv = jnp.dot(xkv_ref[0], wkv_ref[...],
                         preferred_element_type=jnp.float32) + bkv_ref[...]
            k_sc[pl.ds(row, tk), :] = kv[:, :d].astype(k_sc.dtype)
            v_sc[pl.ds(row, tk), :] = kv[:, d:].astype(v_sc.dtype)

        # --- Q projection + online-softmax state init, once per q tile (kk == 0).
        # 1/sqrt(D) is already folded into wq/bq.
        @pl.when(kk == 0)
        def _():
            q = jnp.dot(xq_ref[0], wq_ref[...],
                        preferred_element_type=jnp.float32) + bq_ref[...]
            q_sc[...] = q.astype(q_sc.dtype)
            m_sc[...] = jnp.full_like(m_sc, -jnp.inf)
            l_sc[...] = jnp.zeros_like(l_sc)
            acc_sc[...] = jnp.zeros_like(acc_sc)

        # --- scores = q @ k_tile^T: contract last dims (no transpose copy).
        k_tile = k_sc[pl.ds(row, tk), :]
        v_tile = v_sc[pl.ds(row, tk), :]
        s = lax.dot_general(q_sc[...], k_tile, (((1,), (1,)), ((), ())),
                            preferred_element_type=jnp.float32)        # (TQ, TK)
        if mask_keys:
            key_idx = row + lax.broadcasted_iota(jnp.int32, s.shape, 1)
            s = jnp.where(key_idx < seq_len, s, -jnp.inf)

        # --- online softmax update (running max / sum / accumulator).
        m_prev = m_sc[...]
        m_new = jnp.maximum(m_prev, jnp.max(s, axis=-1, keepdims=True))
        alpha = jnp.exp(m_prev - m_new)
        p = jnp.exp(s - m_new)
        l_sc[...] = alpha * l_sc[...] + jnp.sum(p, axis=-1, keepdims=True)
        acc_sc[...] = alpha * acc_sc[...] + jnp.dot(
            p.astype(v_tile.dtype), v_tile, preferred_element_type=jnp.float32)
        m_sc[...] = m_new

        # --- finalize at the last kv tile: deferred normalization (EUP reciprocal).
        @pl.when(kk == nk - 1)
        def _():
            out = acc_sc[...] * pl.reciprocal(l_sc[...], approx=True)
            o_ref[0] = out.astype(o_ref.dtype)

    return kernel


@functools.partial(jax.jit, static_argnames=("compute_dtype",))
def self_attention(x, wq, bq, wk, bk, wv, bv, *, compute_dtype=jnp.bfloat16):
    """Pallas-TPU SelfAttention forward.

    Weights are PyTorch nn.Linear style (out_features, in_features): y = x @ W^T + b.
    Matmul operands use `compute_dtype` (bf16 default -> MXU fast path); all
    accumulation is f32 and the result is returned in x.dtype.
    """
    B, S, D = x.shape
    out_dtype = x.dtype

    f32 = jnp.float32
    scale = 1.0 / float(D) ** 0.5
    D_pad = _round_up(D, 128)
    S_pad = _round_up(S, 8)

    def pad2(w):                     # (D, D) -> (D_pad, D_pad), zero fill
        return jnp.pad(w, ((0, D_pad - D), (0, D_pad - D)))

    def pad1(b):
        return jnp.pad(b, (0, D_pad - D))

    # Host-side weight prep: transpose to (in, out), fold 1/sqrt(D) into the query
    # projection, fuse K/V into one (D, 2D) matmul, pad to lane-aligned dims.
    w_q = pad2((wq.astype(f32) * scale).T).astype(compute_dtype)
    w_kv = jnp.concatenate(
        [pad2(wk.astype(f32).T), pad2(wv.astype(f32).T)], axis=1).astype(compute_dtype)
    b_q = pad1(bq.astype(f32) * scale).reshape(1, D_pad)               # biases stay f32
    b_kv = jnp.concatenate(
        [pad1(bk.astype(f32)), pad1(bv.astype(f32))]).reshape(1, 2 * D_pad)
    xp = jnp.pad(x, ((0, 0), (0, S_pad - S), (0, D_pad - D))).astype(compute_dtype)

    # Generation-aware tiling: bigger q tiles on 128 MiB-VMEM chips (v5e/v6e),
    # smaller on v7x (64 MiB per TensorCore).
    vmem_cap = _vmem_capacity_bytes()
    tq_cap = 512 if vmem_cap >= (100 << 20) else 256
    TQ = _pick_tile(S_pad, tuple(t for t in (512, 256, 128, 64, 32, 16, 8) if t <= tq_cap))
    TK = _pick_tile(S_pad, (512, 256, 128, 64, 32, 16, 8))
    grid = (B, S_pad // TQ, S_pad // TK)

    cdt = jnp.dtype(compute_dtype).itemsize
    odt = jnp.dtype(out_dtype).itemsize
    tile_bytes = (
        2 * TQ * D_pad * cdt                      # x q-tile (double-buffered)
        + 2 * TK * D_pad * cdt                    # x kv-tile (double-buffered)
        + 2 * 3 * D_pad * D_pad * cdt             # w_q + fused w_kv (double-buffered)
        + 2 * 3 * D_pad * 4                       # biases (f32, double-buffered)
        + 2 * TQ * D_pad * odt                    # output tile (double-buffered)
        + TQ * D_pad * cdt                        # q scratch
        + 2 * S_pad * D_pad * cdt                 # resident K / V scratch
        + TQ * D_pad * 4                          # acc scratch (f32)
        + 2 * TQ * 128 * 4                        # m / l scratch (lane-padded, f32)
        + 3 * TQ * TK * 4                         # score / exp intermediates (f32)
        + 2 * TK * D_pad * 4                      # chunked KV-projection intermediate
        + 2 * TQ * D_pad * 4                      # q / out f32 intermediates
    )
    cap_hi = (100 << 20) if vmem_cap >= (100 << 20) else (56 << 20)
    vmem_limit = int(min(max(int(tile_bytes * 1.25), 32 << 20), cap_hi))

    cost = pl.CostEstimate(
        flops=2 * B * (3 * S * D * D + 2 * S * S * D),
        transcendentals=B * S * S,
        bytes_accessed=2 * B * S * D * odt + (3 * D * D + 3 * D) * odt,
    )

    kernel = _make_kernel(S, S_pad)
    out = pl.pallas_call(
        kernel,
        out_shape=jax.ShapeDtypeStruct((B, S_pad, D_pad), out_dtype),
        grid_spec=pltpu.PrefetchScalarGridSpec(
            num_scalar_prefetch=0,
            grid=grid,
            in_specs=[
                pl.BlockSpec((1, TQ, D_pad), lambda b, j, k: (b, j, 0)),      # x (q rows)
                pl.BlockSpec((1, TK, D_pad), lambda b, j, k: (b, k, 0)),      # x (kv rows)
                pl.BlockSpec((D_pad, D_pad), lambda b, j, k: (0, 0)),         # w_q (scaled, T)
                pl.BlockSpec((1, D_pad), lambda b, j, k: (0, 0)),             # b_q (scaled)
                pl.BlockSpec((D_pad, 2 * D_pad), lambda b, j, k: (0, 0)),     # w_kv (fused, T)
                pl.BlockSpec((1, 2 * D_pad), lambda b, j, k: (0, 0)),         # b_kv (fused)
            ],
            out_specs=pl.BlockSpec((1, TQ, D_pad), lambda b, j, k: (b, j, 0)),
            scratch_shapes=[
                pltpu.VMEM((TQ, D_pad), compute_dtype),     # q tile (cached across kv tiles)
                pltpu.VMEM((S_pad, D_pad), compute_dtype),  # K (resident per batch element)
                pltpu.VMEM((S_pad, D_pad), compute_dtype),  # V
                pltpu.VMEM((TQ, 1), jnp.float32),           # running max m
                pltpu.VMEM((TQ, 1), jnp.float32),           # running sum l
                pltpu.VMEM((TQ, D_pad), jnp.float32),       # output accumulator
            ],
        ),
        compiler_params=pltpu.CompilerParams(
            # K/V scratch written at j == 0 is reused by later q tiles, and the kv
            # axis carries online-softmax state -> both must stay sequential
            # ("arbitrary"); the batch axis is parallel (megacore).
            dimension_semantics=("parallel", "arbitrary", "arbitrary"),
            vmem_limit_bytes=vmem_limit,
        ),
        cost_estimate=cost,
    )(xp, xp, w_q, b_q, w_kv, b_kv)

    return out[:, :S, :D]


def self_attention_ref(x, wq, bq, wk, bk, wv, bv):
    q = x @ wq.T + bq
    k = x @ wk.T + bk
    v = x @ wv.T + bv
    scores = jnp.einsum("bqd,bkd->bqk", q, k) / jnp.sqrt(jnp.float32(x.shape[-1]))
    w = jax.nn.softmax(scores, axis=-1)
    return jnp.einsum("bqk,bkd->bqd", w, v)


if __name__ == "__main__":
    B, S, D = 2, 8, 32  # batch, sequence, in_features

    key = jax.random.PRNGKey(0)
    kx, kwq, kbq, kwk, kbk, kwv, kbv = jax.random.split(key, 7)

    bound = 1.0 / jnp.sqrt(jnp.float32(D))
    x = jax.random.normal(kx, (B, S, D), dtype=jnp.float32)
    wq = jax.random.uniform(kwq, (D, D), jnp.float32, -bound, bound)
    bq = jax.random.uniform(kbq, (D,), jnp.float32, -bound, bound)
    wk = jax.random.uniform(kwk, (D, D), jnp.float32, -bound, bound)
    bk = jax.random.uniform(kbk, (D,), jnp.float32, -bound, bound)
    wv = jax.random.uniform(kwv, (D, D), jnp.float32, -bound, bound)
    bv = jax.random.uniform(kbv, (D,), jnp.float32, -bound, bound)

    # Full-precision path: strict check against the pure-JAX reference
    # (approx reciprocal in the deferred normalization -> ~1e-4 rel error).
    out_f32 = jax.block_until_ready(
        self_attention(x, wq, bq, wk, bk, wv, bv, compute_dtype=jnp.float32))
    ref = self_attention_ref(x, wq, bq, wk, bk, wv, bv)
    assert out_f32.shape == (B, S, D)
    assert jnp.allclose(out_f32, ref, atol=2e-3, rtol=2e-3), "f32 path mismatch"

    # Default bf16 MXU fast path: compare against a reference fed bf16-rounded inputs.
    out_bf16 = jax.block_until_ready(self_attention(x, wq, bq, wk, bk, wv, bv))
    bf = lambda a: a.astype(jnp.bfloat16).astype(jnp.float32)
    ref_bf = self_attention_ref(bf(x), bf(wq), bf(bq), bf(wk), bf(bk), bf(wv), bf(bv))
    assert out_bf16.shape == (B, S, D)
    assert jnp.allclose(out_bf16, ref_bf, atol=2e-2, rtol=2e-2), "bf16 path mismatch"

    print("KERNEL_OK")
</pallas_src>

<mosaic_0001>
module attributes {stable_mosaic.version = 11 : i64} {
  func.func @kernel(%arg0: i32, %arg1: i32, %arg2: i32, %arg3: memref<1x8x128xf32, #tpu.memory_space<vmem>>, %arg4: memref<1x8x128xf32, #tpu.memory_space<vmem>>, %arg5: memref<128x128xf32, #tpu.memory_space<vmem>>, %arg6: memref<1x128xf32, #tpu.memory_space<vmem>>, %arg7: memref<128x256xf32, #tpu.memory_space<vmem>>, %arg8: memref<1x256xf32, #tpu.memory_space<vmem>>, %arg9: memref<1x8x128xf32, #tpu.memory_space<vmem>>, %arg10: memref<8x128xf32, #tpu.memory_space<vmem>>, %arg11: memref<8x128xf32, #tpu.memory_space<vmem>>, %arg12: memref<8x128xf32, #tpu.memory_space<vmem>>, %arg13: memref<8x1xf32, #tpu.memory_space<vmem>>, %arg14: memref<8x1xf32, #tpu.memory_space<vmem>>, %arg15: memref<8x128xf32, #tpu.memory_space<vmem>>) attributes {dimension_semantics = [#tpu.dimension_semantics<parallel>, #tpu.dimension_semantics<arbitrary>, #tpu.dimension_semantics<arbitrary>], iteration_bounds = array<i64: 2, 1, 1>, scalar_prefetch = 0 : i64, scratch_operands = 6 : i64, tpu.core_type = #tpu.core_type<tc>, window_params = [{transform_indices = @transform_0, window_bounds = array<i64: 1, 8, 128>}, {transform_indices = @transform_1, window_bounds = array<i64: 1, 8, 128>}, {pipeline_mode = #tpu.pipeline_mode<synchronous>, transform_indices = @transform_2, window_bounds = array<i64: 128, 128>}, {pipeline_mode = #tpu.pipeline_mode<synchronous>, transform_indices = @transform_3, window_bounds = array<i64: 1, 128>}, {pipeline_mode = #tpu.pipeline_mode<synchronous>, transform_indices = @transform_4, window_bounds = array<i64: 128, 256>}, {pipeline_mode = #tpu.pipeline_mode<synchronous>, transform_indices = @transform_5, window_bounds = array<i64: 1, 256>}, {transform_indices = @transform_6, window_bounds = array<i64: 1, 8, 128>}]} {
    %c8_i32 = arith.constant 8 : i32
    %0 = arith.muli %arg2, %c8_i32 : i32
    %1 = tpu.assume_multiple %0, 8 : i32
    %c0_i32 = arith.constant 0 : i32
    %2 = arith.cmpi eq, %arg1, %c0_i32 : i32
    %3 = arith.extui %2 : i1 to i32
    %c0_i32_0 = arith.constant 0 : i32
    %4 = arith.cmpi ne, %3, %c0_i32_0 : i32
    scf.if %4 {
      %c0_23 = arith.constant 0 : index
      %c0_24 = arith.constant 0 : index
      %c0_25 = arith.constant 0 : index
      %39 = vector.load %arg4[%c0_23, %c0_24, %c0_25] : memref<1x8x128xf32, #tpu.memory_space<vmem>>, vector<1x8x128xf32>
      %40 = vector.shape_cast %39 : vector<1x8x128xf32> to vector<8x128xf32>
      %c0_26 = arith.constant 0 : index
      %c0_27 = arith.constant 0 : index
      %41 = vector.load %arg7[%c0_26, %c0_27] : memref<128x256xf32, #tpu.memory_space<vmem>>, vector<128x256xf32>
      %cst_28 = arith.constant dense<0.000000e+00> : vector<8x256xf32>
      %42 = tpu.matmul %40, %41, %cst_28 {dimension_numbers = #tpu.dot_dimension_numbers<[1], [0], [0], [1], [0, 0, 1, 1], [], []>} : vector<8x128xf32>, vector<128x256xf32>, vector<8x256xf32> -> vector<8x256xf32>
      %c0_29 = arith.constant 0 : index
      %c0_30 = arith.constant 0 : index
      %43 = vector.load %arg8[%c0_29, %c0_30] : memref<1x256xf32, #tpu.memory_space<vmem>>, vector<1x256xf32>
      %44 = vector.broadcast %43 : vector<1x256xf32> to vector<8x256xf32>
      %45 = arith.addf %42, %44 : vector<8x256xf32>
      %46 = vector.extract_strided_slice %45 {offsets = [0, 0], sizes = [8, 128], strides = [1, 1]} : vector<8x256xf32> to vector<8x128xf32>
      %47 = arith.index_cast %1 : i32 to index
      %c0_31 = arith.constant 0 : index
      %48 = vector.load %arg11[%47, %c0_31] : memref<8x128xf32, #tpu.memory_space<vmem>>, vector<8x128xf32>
      tpu.vector_store %arg11[%47, %c0_31], %46 {strides = array<i32>} : memref<8x128xf32, #tpu.memory_space<vmem>>, vector<8x128xf32>,
      %49 = vector.extract_strided_slice %45 {offsets = [0, 128], sizes = [8, 128], strides = [1, 1]} : vector<8x256xf32> to vector<8x128xf32>
      %50 = arith.index_cast %1 : i32 to index
      %c0_32 = arith.constant 0 : index
      %51 = vector.load %arg12[%50, %c0_32] : memref<8x128xf32, #tpu.memory_space<vmem>>, vector<8x128xf32>
      tpu.vector_store %arg12[%50, %c0_32], %49 {strides = array<i32>} : memref<8x128xf32, #tpu.memory_space<vmem>>, vector<8x128xf32>,
    } else {
    }
    %c0_i32_1 = arith.constant 0 : i32
    %5 = arith.cmpi eq, %arg2, %c0_i32_1 : i32
    %6 = arith.extui %5 : i1 to i32
    %c0_i32_2 = arith.constant 0 : i32
    %7 = arith.cmpi ne, %6, %c0_i32_2 : i32
    scf.if %7 {
      %c0_23 = arith.constant 0 : index
      %c0_24 = arith.constant 0 : index
      %c0_25 = arith.constant 0 : index
      %39 = vector.load %arg3[%c0_23, %c0_24, %c0_25] : memref<1x8x128xf32, #tpu.memory_space<vmem>>, vector<1x8x128xf32>
      %40 = vector.shape_cast %39 : vector<1x8x128xf32> to vector<8x128xf32>
      %c0_26 = arith.constant 0 : index
      %c0_27 = arith.constant 0 : index
      %41 = vector.load %arg5[%c0_26, %c0_27] : memref<128x128xf32, #tpu.memory_space<vmem>>, vector<128x128xf32>
      %cst_28 = arith.constant dense<0.000000e+00> : vector<8x128xf32>
      %42 = tpu.matmul %40, %41, %cst_28 {dimension_numbers = #tpu.dot_dimension_numbers<[1], [0], [0], [1], [0, 0, 1, 1], [], []>} : vector<8x128xf32>, vector<128x128xf32>, vector<8x128xf32> -> vector<8x128xf32>
      %c0_29 = arith.constant 0 : index
      %c0_30 = arith.constant 0 : index
      %43 = vector.load %arg6[%c0_29, %c0_30] : memref<1x128xf32, #tpu.memory_space<vmem>>, vector<1x128xf32>
      %44 = vector.broadcast %43 : vector<1x128xf32> to vector<8x128xf32>
      %45 = arith.addf %42, %44 : vector<8x128xf32>
      %c0_31 = arith.constant 0 : index
      %c0_32 = arith.constant 0 : index
      %46 = vector.load %arg10[%c0_31, %c0_32] : memref<8x128xf32, #tpu.memory_space<vmem>>, vector<8x128xf32>
      tpu.vector_store %arg10[%c0_31, %c0_32], %45 {strides = array<i32>} : memref<8x128xf32, #tpu.memory_space<vmem>>, vector<8x128xf32>,
      %cst_33 = arith.constant 0xFF800000 : f32
      %47 = vector.broadcast %cst_33 : f32 to vector<8x1xf32>
      %c0_34 = arith.constant 0 : index
      %c0_35 = arith.constant 0 : index
      %48 = vector.load %arg13[%c0_34, %c0_35] : memref<8x1xf32, #tpu.memory_space<vmem>>, vector<8x1xf32>
      tpu.vector_store %arg13[%c0_34, %c0_35], %47 {strides = array<i32>} : memref<8x1xf32, #tpu.memory_space<vmem>>, vector<8x1xf32>,
      %cst_36 = arith.constant 0.000000e+00 : f32
      %49 = vector.broadcast %cst_36 : f32 to vector<8x1xf32>
      %c0_37 = arith.constant 0 : index
      %c0_38 = arith.constant 0 : index
      %50 = vector.load %arg14[%c0_37, %c0_38] : memref<8x1xf32, #tpu.memory_space<vmem>>, vector<8x1xf32>
      tpu.vector_store %arg14[%c0_37, %c0_38], %49 {strides = array<i32>} : memref<8x1xf32, #tpu.memory_space<vmem>>, vector<8x1xf32>,
      %cst_39 = arith.constant 0.000000e+00 : f32
      %51 = vector.broadcast %cst_39 : f32 to vector<8x128xf32>
      %c0_40 = arith.constant 0 : index
      %c0_41 = arith.constant 0 : index
      %52 = vector.load %arg15[%c0_40, %c0_41] : memref<8x128xf32, #tpu.memory_space<vmem>>, vector<8x128xf32>
      tpu.vector_store %arg15[%c0_40, %c0_41], %51 {strides = array<i32>} : memref<8x128xf32, #tpu.memory_space<vmem>>, vector<8x128xf32>,
    } else {
    }
    %8 = arith.index_cast %1 : i32 to index
    %c0 = arith.constant 0 : index
    %9 = vector.load %arg11[%8, %c0] : memref<8x128xf32, #tpu.memory_space<vmem>>, vector<8x128xf32>
    %10 = arith.index_cast %1 : i32 to index
    %c0_3 = arith.constant 0 : index
    %11 = vector.load %arg12[%10, %c0_3] : memref<8x128xf32, #tpu.memory_space<vmem>>, vector<8x128xf32>
    %c0_4 = arith.constant 0 : index
    %c0_5 = arith.constant 0 : index
    %12 = vector.load %arg10[%c0_4, %c0_5] : memref<8x128xf32, #tpu.memory_space<vmem>>, vector<8x128xf32>
    %cst = arith.constant dense<0.000000e+00> : vector<8x8xf32>
    %13 = tpu.matmul %12, %9, %cst {dimension_numbers = #tpu.dot_dimension_numbers<[1], [1], [0], [0], [0, 0, 1, 0], [], []>} : vector<8x128xf32>, vector<8x128xf32>, vector<8x8xf32> -> vector<8x8xf32>
    %c0_6 = arith.constant 0 : index
    %c0_7 = arith.constant 0 : index
    %14 = vector.load %arg13[%c0_6, %c0_7] : memref<8x1xf32, #tpu.memory_space<vmem>>, vector<8x1xf32>
    %cst_8 = arith.constant dense<0xFF800000> : vector<8xf32>
    %15 = vector.multi_reduction <maximumf>, %13, %cst_8 [1] : vector<8x8xf32> to vector<8xf32>
    %16 = vector.shape_cast %15 : vector<8xf32> to vector<8x1xf32>
    %17 = arith.maximumf %14, %16 : vector<8x1xf32>
    %18 = arith.subf %14, %17 : vector<8x1xf32>
    %19 = math.exp %18 : vector<8x1xf32>
    %20 = vector.broadcast %17 : vector<8x1xf32> to vector<8x8xf32>
    %21 = arith.subf %13, %20 : vector<8x8xf32>
    %22 = math.exp %21 : vector<8x8xf32>
    %c0_9 = arith.constant 0 : index
    %c0_10 = arith.constant 0 : index
    %23 = vector.load %arg14[%c0_9, %c0_10] : memref<8x1xf32, #tpu.memory_space<vmem>>, vector<8x1xf32>
    %24 = arith.mulf %19, %23 : vector<8x1xf32>
    %cst_11 = arith.constant dense<0.000000e+00> : vector<8xf32>
    %25 = vector.multi_reduction <add>, %22, %cst_11 [1] : vector<8x8xf32> to vector<8xf32>
    %26 = vector.shape_cast %25 : vector<8xf32> to vector<8x1xf32>
    %27 = arith.addf %24, %26 : vector<8x1xf32>
    %c0_12 = arith.constant 0 : index
    %c0_13 = arith.constant 0 : index
    %28 = vector.load %arg14[%c0_12, %c0_13] : memref<8x1xf32, #tpu.memory_space<vmem>>, vector<8x1xf32>
    tpu.vector_store %arg14[%c0_12, %c0_13], %27 {strides = array<i32>} : memref<8x1xf32, #tpu.memory_space<vmem>>, vector<8x1xf32>,
    %c0_14 = arith.constant 0 : index
    %c0_15 = arith.constant 0 : index
    %29 = vector.load %arg15[%c0_14, %c0_15] : memref<8x128xf32, #tpu.memory_space<vmem>>, vector<8x128xf32>
    %30 = vector.broadcast %19 : vector<8x1xf32> to vector<8x128xf32>
    %31 = arith.mulf %30, %29 : vector<8x128xf32>
    %cst_16 = arith.constant dense<0.000000e+00> : vector<8x128xf32>
    %32 = tpu.matmul %22, %11, %cst_16 {dimension_numbers = #tpu.dot_dimension_numbers<[1], [0], [0], [1], [0, 0, 1, 1], [], []>} : vector<8x8xf32>, vector<8x128xf32>, vector<8x128xf32> -> vector<8x128xf32>
    %33 = arith.addf %31, %32 : vector<8x128xf32>
    %c0_17 = arith.constant 0 : index
    %c0_18 = arith.constant 0 : index
    %34 = vector.load %arg15[%c0_17, %c0_18] : memref<8x128xf32, #tpu.memory_space<vmem>>, vector<8x128xf32>
    tpu.vector_store %arg15[%c0_17, %c0_18], %33 {strides = array<i32>} : memref<8x128xf32, #tpu.memory_space<vmem>>, vector<8x128xf32>,
    %c0_19 = arith.constant 0 : index
    %c0_20 = arith.constant 0 : index
    %35 = vector.load %arg13[%c0_19, %c0_20] : memref<8x1xf32, #tpu.memory_space<vmem>>, vector<8x1xf32>
    tpu.vector_store %arg13[%c0_19, %c0_20], %17 {strides = array<i32>} : memref<8x1xf32, #tpu.memory_space<vmem>>, vector<8x1xf32>,
    %c0_i32_21 = arith.constant 0 : i32
    %36 = arith.cmpi eq, %arg2, %c0_i32_21 : i32
    %37 = arith.extui %36 : i1 to i32
    %c0_i32_22 = arith.constant 0 : i32
    %38 = arith.cmpi ne, %37, %c0_i32_22 : i32
    scf.if %38 {
      %c0_23 = arith.constant 0 : index
      %c0_24 = arith.constant 0 : index
      %39 = vector.load %arg15[%c0_23, %c0_24] : memref<8x128xf32, #tpu.memory_space<vmem>>, vector<8x128xf32>
      %c0_25 = arith.constant 0 : index
      %c0_26 = arith.constant 0 : index
      %40 = vector.load %arg14[%c0_25, %c0_26] : memref<8x1xf32, #tpu.memory_space<vmem>>, vector<8x1xf32>
      %41 = tpu.reciprocal %40 {approx = true} : vector<8x1xf32> -> vector<8x1xf32>
      %42 = vector.broadcast %41 : vector<8x1xf32> to vector<8x128xf32>
      %43 = arith.mulf %39, %42 : vector<8x128xf32>
      %c0_27 = arith.constant 0 : index
      %c0_28 = arith.constant 0 : index
      %c0_29 = arith.constant 0 : index
      %44 = vector.load %arg9[%c0_27, %c0_28, %c0_29] : memref<1x8x128xf32, #tpu.memory_space<vmem>>, vector<1x8x128xf32>
      %45 = vector.shape_cast %44 : vector<1x8x128xf32> to vector<8x128xf32>
      %46 = vector.shape_cast %43 : vector<8x128xf32> to vector<1x8x128xf32>
      tpu.vector_store %arg9[%c0_27, %c0_28, %c0_29], %46 {strides = array<i32>} : memref<1x8x128xf32, #tpu.memory_space<vmem>>, vector<1x8x128xf32>,
    } else {
    }
    return
  }
  func.func @transform_0(%arg0: i32, %arg1: i32, %arg2: i32) -> (i32, i32, i32) {
    %c0_i32 = arith.constant 0 : i32
    %c0_i32_0 = arith.constant 0 : i32
    return %arg0, %arg1, %c0_i32 : i32, i32, i32
  }
  func.func @transform_1(%arg0: i32, %arg1: i32, %arg2: i32) -> (i32, i32, i32) {
    %c0_i32 = arith.constant 0 : i32
    %c0_i32_0 = arith.constant 0 : i32
    return %arg0, %arg2, %c0_i32 : i32, i32, i32
  }
  func.func @transform_2(%arg0: i32, %arg1: i32, %arg2: i32) -> (i32, i32) {
    %c0_i32 = arith.constant 0 : i32
    %c0_i32_0 = arith.constant 0 : i32
    %c0_i32_1 = arith.constant 0 : i32
    return %c0_i32, %c0_i32_0 : i32, i32
  }
  func.func @transform_3(%arg0: i32, %arg1: i32, %arg2: i32) -> (i32, i32) {
    %c0_i32 = arith.constant 0 : i32
    %c0_i32_0 = arith.constant 0 : i32
    %c0_i32_1 = arith.constant 0 : i32
    return %c0_i32, %c0_i32_0 : i32, i32
  }
  func.func @transform_4(%arg0: i32, %arg1: i32, %arg2: i32) -> (i32, i32) {
    %c0_i32 = arith.constant 0 : i32
    %c0_i32_0 = arith.constant 0 : i32
    %c0_i32_1 = arith.constant 0 : i32
    return %c0_i32, %c0_i32_0 : i32, i32
  }
  func.func @transform_5(%arg0: i32, %arg1: i32, %arg2: i32) -> (i32, i32) {
    %c0_i32 = arith.constant 0 : i32
    %c0_i32_0 = arith.constant 0 : i32
    %c0_i32_1 = arith.constant 0 : i32
    return %c0_i32, %c0_i32_0 : i32, i32
  }
  func.func @transform_6(%arg0: i32, %arg1: i32, %arg2: i32) -> (i32, i32, i32) {
    %c0_i32 = arith.constant 0 : i32
    %c0_i32_0 = arith.constant 0 : i32
    return %arg0, %arg1, %c0_i32 : i32, i32, i32
  }
}

</mosaic_0001>

<llo_original>
// kernel: self_attention.1
$region0: #{self_attention.1}
  #allocation0 [shape = 'u32[]', space=smem, size = 0x4, offset = 0x4, fixed_abs, tag = 'smem constant byte address 0x4 - core index']
  #allocation1 [shape = 'u32[144,128]{1,0:T(1,128)}', space=vmem, size = 0x12000, scoped, tag = 'internal scratch']
  #allocation2 [shape = 'f32[8,128]{1,0:T(8,128)}', space=vmem, size = 0x1000, scoped, tag = 'scratch operand']
  #allocation3 [shape = 'f32[8,128]{1,0:T(8,128)}', space=vmem, size = 0x1000, scoped, tag = 'scratch operand']
  #allocation4 [shape = 'f32[8,128]{1,0:T(8,128)}', space=vmem, size = 0x1000, scoped, tag = 'scratch operand']
  #allocation5 [shape = 'f32[8,1]{1,0:T(8,128)}', space=vmem, size = 0x1000, scoped, tag = 'scratch operand']
  #allocation6 [shape = 'f32[8,1]{1,0:T(8,128)}', space=vmem, size = 0x1000, scoped, tag = 'scratch operand']
  #allocation7 [shape = 'f32[8,128]{1,0:T(8,128)}', space=vmem, size = 0x1000, scoped, tag = 'scratch operand']
  %s0 = inlined_call_operand.vmem [shape: f32[2,8,128], index: 0, kind: input, shape index: {}, may-alias: {0,1}]
  %s1 = inlined_call_operand.vmem [shape: f32[2,8,128], index: 1, kind: input, shape index: {}, may-alias: {0,1}]
  %s2 = inlined_call_operand.vmem [shape: f32[128,128], index: 2, kind: input, shape index: {}]
  %s3 = inlined_call_operand.vmem [shape: f32[1,128], index: 3, kind: input, shape index: {}]
  %s4 = inlined_call_operand.vmem [shape: f32[128,256], index: 4, kind: input, shape index: {}]
  %s5 = inlined_call_operand.vmem [shape: f32[1,256], index: 5, kind: input, shape index: {}]
  %s6 = inlined_call_operand.hbm [shape: f32[2,8,128], index: 6, kind: output, shape index: {}]
  %s7 = sld [smem:[#allocation0]]
  $region69: #{self_attention.1} parent=0
    _
  %s9 = ssub.s32 1, %s7
  %s10 = scalar_select 0, %s9, %s7
  $region1: #{self_attention.1} parent=0
    #allocation8 [shape = 'u8[8192]{0}', space=vmem, size = 0x2000, scoped, tag = 'output window, operand 0']
    #allocation9 [shape = 's32[2]{0}', space=sflag, size = 0x8, scoped, tag = 'scoped memory for self_attention.1']
    %11 = vsyncpa [#allocation9], 0
    %s12 = scalar_lea.sflag [#allocation9], 1
    %13 = vsyncpa %s12, 0
    loop: start=0, step=1, limit=4
    $region2: #{self_attention.1} parent=1 // loop_pre_header
      _
    $region3: #{self_attention.1} parent=1 // loop_header
      %s15 = sphi 0, %s19
      %p16 = scmp.ge.s32.totalorder %s15, 4
      %s22 = sphi 0, %s41
      %s23 = sphi 0, %s37
      %s24 = sphi 0, %s33
      %s25 = sphi 0, %s22
      %s26 = sphi 0, %s23
      %s27 = sphi 0, %s24
      %s28 = sphi 0, %s25
      %s29 = sphi 0, %s26
      %s30 = sphi 0, %s27
      %s46 = sphi 0, %s48
      %s49 = sphi 0, %s46
      %s50 = sphi 0, %s49
      %s66 = sphi 0, %s50
      %s74 = sphi 0, %s76
      %s77 = sphi 0, %s74
      %s78 = sphi 0, %s77
      %s94 = sphi 0, %s78
      %s98 = sphi 0, %s98
      %s100 = sphi 0, %s98
      %s101 = sphi 0, %s100
      %s115 = sphi 0, %s101
      %s119 = sphi 0, %s119
      %s121 = sphi 0, %s119
      %s122 = sphi 0, %s121
      %s136 = sphi 0, %s122
      %s140 = sphi 0, %s140
      %s142 = sphi 0, %s140
      %s143 = sphi 0, %s142
      %s157 = sphi 0, %s143
      %s161 = sphi 0, %s161
      %s163 = sphi 0, %s161
      %s164 = sphi 0, %s163
      %s178 = sphi 0, %s164
      %s186 = sphi 0, %s188
      %s189 = sphi 0, %s186
      %s190 = sphi 0, %s189
      %s206 = sphi 0, %s190
    $region4: #{self_attention.1} parent=1 // loop_header_branch
      %18 = sbr.rel (%p16) target = $region8
    $region5: #{self_attention.1} parent=1 // loop_body
      %s20 = ssub.s32 %s15, 1
      %s21 = ssub.s32 %s15, 2
      %s31 = sadd.s32 1, %s24
      %p32 = scmp.ge.s32.totalorder %s31, 1
      %s33 = scalar_select %p32, 0, %s31
      %s34 = sadd.s32 1, %s23
      %s35 = scalar_select %p32, %s34, %s23
      %p36 = scmp.ge.s32.totalorder %s35, 1
      %s37 = scalar_select %p36, 0, %s35
      %s38 = sadd.s32 1, %s22
      %s39 = scalar_select %p36, %s38, %s22
      %p40 = scmp.ge.s32.totalorder %s39, 2
      %s41 = scalar_select %p40, 0, %s39
      %s42 = ssub.s32 %s22, %s41
      %s43 = ssub.s32 %s23, %s37
      %s44 = sor.u32 %s42, %s43
      %p45 = scmp.eq.s32.totalorder %s44, 0
      %s47 = sadd.s32 %s46, 1
      %s48 = scalar_select %p45, %s46, %s47
      %p51 = pneg %p45
      %p52 = scmp.eq.s32.totalorder %s15, 1
      %p53 = por %p51, %p52
      %p54 = scmp.ne.s32.totalorder %s46, %s49
      %p55 = scmp.eq.s32.totalorder %s15, 0
      %p56 = por %p54, %p55
      %p57 = scmp.ne.s32.totalorder %s46, %s49
      %p58 = scmp.eq.s32.totalorder %s20, 1
      %p59 = por %p57, %p58
      %p60 = scmp.ne.s32.totalorder %s49, %s50
      %p61 = scmp.eq.s32.totalorder %s20, 0
      %p62 = por %p60, %p61
      %p63 = scmp.ne.s32.totalorder %s49, %s50
      %p64 = scmp.eq.s32.totalorder %s21, 1
      %p65 = por %p63, %p64
      %p67 = scmp.ne.s32.totalorder %s50, %s66
      %p68 = scmp.eq.s32.totalorder %s21, 0
      %p69 = por %p67, %p68
      %s70 = ssub.s32 %s22, %s41
      %s71 = ssub.s32 %s24, %s33
      %s72 = sor.u32 %s70, %s71
      %p73 = scmp.eq.s32.totalorder %s72, 0
      %s75 = sadd.s32 %s74, 1
      %s76 = scalar_select %p73, %s74, %s75
      %p79 = pneg %p73
      %p80 = scmp.eq.s32.totalorder %s15, 1
      %p81 = por %p79, %p80
      %p82 = scmp.ne.s32.totalorder %s74, %s77
      %p83 = scmp.eq.s32.totalorder %s15, 0
      %p84 = por %p82, %p83
      %p85 = scmp.ne.s32.totalorder %s74, %s77
      %p86 = scmp.eq.s32.totalorder %s20, 1
      %p87 = por %p85, %p86
      %p88 = scmp.ne.s32.totalorder %s77, %s78
      %p89 = scmp.eq.s32.totalorder %s20, 0
      %p90 = por %p88, %p89
      %p91 = scmp.ne.s32.totalorder %s77, %s78
      %p92 = scmp.eq.s32.totalorder %s21, 1
      %p93 = por %p91, %p92
      %p95 = scmp.ne.s32.totalorder %s78, %s94
      %p96 = scmp.eq.s32.totalorder %s21, 0
      %p97 = por %p95, %p96
      %s99 = sadd.s32 %s98, 1
      %p102 = scmp.eq.s32.totalorder %s15, 1
      %p103 = scmp.ne.s32.totalorder %s98, %s100
      %p104 = scmp.eq.s32.totalorder %s15, 0
      %p105 = por %p103, %p104
      %p106 = scmp.ne.s32.totalorder %s98, %s100
      %p107 = scmp.eq.s32.totalorder %s20, 1
      %p108 = por %p106, %p107
      %p109 = scmp.ne.s32.totalorder %s100, %s101
      %p110 = scmp.eq.s32.totalorder %s20, 0
      %p111 = por %p109, %p110
      %p112 = scmp.ne.s32.totalorder %s100, %s101
      %p113 = scmp.eq.s32.totalorder %s21, 1
      %p114 = por %p112, %p113
      %p116 = scmp.ne.s32.totalorder %s101, %s115
      %p117 = scmp.eq.s32.totalorder %s21, 0
      %p118 = por %p116, %p117
      %s120 = sadd.s32 %s119, 1
      %p123 = scmp.eq.s32.totalorder %s15, 1
      %p124 = scmp.ne.s32.totalorder %s119, %s121
      %p125 = scmp.eq.s32.totalorder %s15, 0
      %p126 = por %p124, %p125
      %p127 = scmp.ne.s32.totalorder %s119, %s121
      %p128 = scmp.eq.s32.totalorder %s20, 1
      %p129 = por %p127, %p128
      %p130 = scmp.ne.s32.totalorder %s121, %s122
      %p131 = scmp.eq.s32.totalorder %s20, 0
      %p132 = por %p130, %p131
      %p133 = scmp.ne.s32.totalorder %s121, %s122
      %p134 = scmp.eq.s32.totalorder %s21, 1
      %p135 = por %p133, %p134
      %p137 = scmp.ne.s32.totalorder %s122, %s136
      %p138 = scmp.eq.s32.totalorder %s21, 0
      %p139 = por %p137, %p138
      %s141 = sadd.s32 %s140, 1
      %p144 = scmp.eq.s32.totalorder %s15, 1
      %p145 = scmp.ne.s32.totalorder %s140, %s142
      %p146 = scmp.eq.s32.totalorder %s15, 0
      %p147 = por %p145, %p146
      %p148 = scmp.ne.s32.totalorder %s140, %s142
      %p149 = scmp.eq.s32.totalorder %s20, 1
      %p150 = por %p148, %p149
      %p151 = scmp.ne.s32.totalorder %s142, %s143
      %p152 = scmp.eq.s32.totalorder %s20, 0
      %p153 = por %p151, %p152
      %p154 = scmp.ne.s32.totalorder %s142, %s143
      %p155 = scmp.eq.s32.totalorder %s21, 1
      %p156 = por %p154, %p155
      %p158 = scmp.ne.s32.totalorder %s143, %s157
      %p159 = scmp.eq.s32.totalorder %s21, 0
      %p160 = por %p158, %p159
      %s162 = sadd.s32 %s161, 1
      %p165 = scmp.eq.s32.totalorder %s15, 1
      %p166 = scmp.ne.s32.totalorder %s161, %s163
      %p167 = scmp.eq.s32.totalorder %s15, 0
      %p168 = por %p166, %p167
      %p169 = scmp.ne.s32.totalorder %s161, %s163
      %p170 = scmp.eq.s32.totalorder %s20, 1
      %p171 = por %p169, %p170
      %p172 = scmp.ne.s32.totalorder %s163, %s164
      %p173 = scmp.eq.s32.totalorder %s20, 0
      %p174 = por %p172, %p173
      %p175 = scmp.ne.s32.totalorder %s163, %s164
      %p176 = scmp.eq.s32.totalorder %s21, 1
      %p177 = por %p175, %p176
      %p179 = scmp.ne.s32.totalorder %s164, %s178
      %p180 = scmp.eq.s32.totalorder %s21, 0
      %p181 = por %p179, %p180
      %s182 = ssub.s32 %s22, %s41
      %s183 = ssub.s32 %s23, %s37
      %s184 = sor.u32 %s182, %s183
      %p185 = scmp.eq.s32.totalorder %s184, 0
      %s187 = sadd.s32 %s186, 1
      %s188 = scalar_select %p185, %s186, %s187
      %p191 = pneg %p185
      %p192 = scmp.eq.s32.totalorder %s15, 1
      %p193 = por %p191, %p192
      %p194 = scmp.ne.s32.totalorder %s186, %s189
      %p195 = scmp.eq.s32.totalorder %s15, 0
      %p196 = por %p194, %p195
      %p197 = scmp.ne.s32.totalorder %s186, %s189
      %p198 = scmp.eq.s32.totalorder %s20, 1
      %p199 = por %p197, %p198
      %p200 = scmp.ne.s32.totalorder %s189, %s190
      %p201 = scmp.eq.s32.totalorder %s20, 0
      %p202 = por %p200, %p201
      %p203 = scmp.ne.s32.totalorder %s189, %s190
      %p204 = scmp.eq.s32.totalorder %s21, 1
      %p205 = por %p203, %p204
      %p207 = scmp.ne.s32.totalorder %s190, %s206
      %p208 = scmp.eq.s32.totalorder %s21, 0
      %p209 = por %p207, %p208
      %p210 = scmp.le.s32.totalorder 1, %s15
      %p211 = scmp.lt.s32.totalorder %s15, 3
      %p212 = pnand %p210, %p211
      %p213 = pneg %p212
      // Predicated region
      $region9: #{self_attention.1} parent=5 // pred_check
        _
      $region10: #{self_attention.1} parent=5 // pred_check_branch
        %215 = sbr.rel (%p212) target = $region12
      $region11: #{self_attention.1} parent=5 // pred_region
        %s216 = ssub.s32 %s15, 1
        // Predicated region
        $region13: #{self_attention.1} parent=11 // pred_check
          %p217 = pneg %p111
        $region14: #{self_attention.1} parent=11 // pred_check_branch
          %219 = sbr.rel (%p217) target = $region16
        $region15: #{self_attention.1} parent=11 // pred_region
          _
        $region16: #{self_attention.1} parent=11 // pred_fallthru
          _
        // Predicated region
        $region17: #{self_attention.1} parent=11 // pred_check
          %p220 = pneg %p132
        $region18: #{self_attention.1} parent=11 // pred_check_branch
          %222 = sbr.rel (%p220) target = $region20
        $region19: #{self_attention.1} parent=11 // pred_region
          _
        $region20: #{self_attention.1} parent=11 // pred_fallthru
          _
        // Predicated region
        $region21: #{self_attention.1} parent=11 // pred_check
          %p223 = pneg %p153
        $region22: #{self_attention.1} parent=11 // pred_check_branch
          %225 = sbr.rel (%p223) target = $region24
        $region23: #{self_attention.1} parent=11 // pred_region
          _
        $region24: #{self_attention.1} parent=11 // pred_fallthru
          _
        // Predicated region
        $region25: #{self_attention.1} parent=11 // pred_check
          %p226 = pneg %p174
        $region26: #{self_attention.1} parent=11 // pred_check_branch
          %228 = sbr.rel (%p226) target = $region28
        $region27: #{self_attention.1} parent=11 // pred_region
          _
        $region28: #{self_attention.1} parent=11 // pred_fallthru
          _
      $region12: #{self_attention.1} parent=5 // pred_fallthru
        _
      %p229 = scmp.lt.s32.totalorder %s15, 2
      // Predicated region
      $region29: #{self_attention.1} parent=5 // pred_check
        %p230 = pneg %p229
      $region30: #{self_attention.1} parent=5 // pred_check_branch
        %232 = sbr.rel (%p230) target = $region32
      $region31: #{self_attention.1} parent=5 // pred_region
        // Predicated region
        $region33: #{self_attention.1} parent=31 // pred_check
          %p233 = pneg %p56
        $region34: #{self_attention.1} parent=31 // pred_check_branch
          %235 = sbr.rel (%p233) target = $region36
        $region35: #{self_attention.1} parent=31 // pred_region
          %p236 = scmp.lt.s32.totalorder %s22, 1
          %s237 = scalar_select %p236, %s22, 1
          %p238 = scmp.lt.s32.totalorder %s23, 0
          %s239 = scalar_select %p238, %s23, 0
          %s240 = sadd.s32 %s239, %s237
          %s241 = smul.addr %s240, 8
          %s242 = scalar_lea.vmem %s0, %s241
        $region36: #{self_attention.1} parent=31 // pred_fallthru
          _
        // Predicated region
        $region37: #{self_attention.1} parent=31 // pred_check
          %p243 = pneg %p84
        $region38: #{self_attention.1} parent=31 // pred_check_branch
          %245 = sbr.rel (%p243) target = $region40
        $region39: #{self_attention.1} parent=31 // pred_region
          %p246 = scmp.lt.s32.totalorder %s22, 1
          %s247 = scalar_select %p246, %s22, 1
          %p248 = scmp.lt.s32.totalorder %s24, 0
          %s249 = scalar_select %p248, %s24, 0
          %s250 = sadd.s32 %s249, %s247
          %s251 = smul.addr %s250, 8
          %s252 = scalar_lea.vmem %s1, %s251
        $region40: #{self_attention.1} parent=31 // pred_fallthru
          _
      $region32: #{self_attention.1} parent=5 // pred_fallthru
        _
      %p253 = scmp.le.s32.totalorder 1, %s15
      %p254 = scmp.lt.s32.totalorder %s15, 3
      %p255 = pnand %p253, %p254
      %p256 = pneg %p255
      // Predicated region
      $region41: #{self_attention.1} parent=5 // pred_check
        _
      $region42: #{self_attention.1} parent=5 // pred_check_branch
        %258 = sbr.rel (%p255) target = $region44
      $region43: #{self_attention.1} parent=5 // pred_region
        %s259 = ssub.s32 %s15, 1
        %p260 = scmp.lt.s32.totalorder %s25, 1
        %s261 = scalar_select %p260, %s25, 1
        %p262 = scmp.lt.s32.totalorder %s26, 0
        %s263 = scalar_select %p262, %s26, 0
        %s264 = sadd.s32 %s263, %s261
        %s265 = smul.addr %s264, 8
        %s266 = scalar_lea.vmem %s0, %s265
        %p267 = pneg %p62
        %p268 = pneg %p59
        %p269 = scmp.lt.s32.totalorder %s25, 1
        %s270 = scalar_select %p269, %s25, 1
        %p271 = scmp.lt.s32.totalorder %s27, 0
        %s272 = scalar_select %p271, %s27, 0
        %s273 = sadd.s32 %s272, %s270
        %s274 = smul.addr %s273, 8
        %s275 = scalar_lea.vmem %s1, %s274
        %p276 = pneg %p90
        %p277 = pneg %p87
        %p278 = pneg %p111
        %p279 = pneg %p108
        %p280 = pneg %p132
        %p281 = pneg %p129
        %p282 = pneg %p153
        %p283 = pneg %p150
        %p284 = pneg %p174
        %p285 = pneg %p171
        %p286 = pneg %p202
        %p287 = pneg %p199
        %s288 = sand.u32 %s189, 1
        %s289 = scalar_lea.sflag [#allocation9], %s288
        %s290 = sand.u32 %s189, 1
        %s291 = smul.addr %s290, 8
        %s292 = scalar_lea.vmem [#allocation8], %s291
        %p293 = scmp.lt.s32.totalorder %s25, 1
        %s294 = scalar_select %p293, %s25, 1
        %p295 = scmp.lt.s32.totalorder %s26, 0
        %s296 = scalar_select %p295, %s26, 0
        %s297 = sadd.s32 %s296, %s294
        %s298 = smul.addr %s297, 8
        %s299 = scalar_lea.vmem %s0, %s298
        %p300 = scmp.lt.s32.totalorder %s25, 1
        %s301 = scalar_select %p300, %s25, 1
        %p302 = scmp.lt.s32.totalorder %s27, 0
        %s303 = scalar_select %p302, %s27, 0
        %s304 = sadd.s32 %s303, %s301
        %s305 = smul.addr %s304, 8
        %s306 = scalar_lea.vmem %s1, %s305
        %s307 = smul.u32 %s27, 8
        %p308 = scmp.eq.s32.totalorder %s26, 0
        // Predicated region
        $region45: #{self_attention.1} parent=43 // pred_check
          %p309 = pneg %p308
        $region46: #{self_attention.1} parent=43 // pred_check_branch
          %311 = sbr.rel (%p309) target = $region48
        $region47: #{self_attention.1} parent=43 // pred_region
          %v312 = vld [vmem:[%s306] sm:$0xff]
          %v313 = vld [vmem:[%s4] sm:$0xff]
          %v314 = vld [vmem:[%s4 + $0x8] sm:$0xff]
          %v315 = vld [vmem:[%s4 + $0x10] sm:$0xff]
          %v316 = vld [vmem:[%s4 + $0x18] sm:$0xff]
          %v317 = vld [vmem:[%s4 + $0x20] sm:$0xff]
          %v318 = vld [vmem:[%s4 + $0x28] sm:$0xff]
          %v319 = vld [vmem:[%s4 + $0x30] sm:$0xff]
          %v320 = vld [vmem:[%s4 + $0x38] sm:$0xff]
          %v321 = vld [vmem:[%s4 + $0x40] sm:$0xff]
          %v322 = vld [vmem:[%s4 + $0x48] sm:$0xff]
          %v323 = vld [vmem:[%s4 + $0x50] sm:$0xff]
          %v324 = vld [vmem:[%s4 + $0x58] sm:$0xff]
          %v325 = vld [vmem:[%s4 + $0x60] sm:$0xff]
          %v326 = vld [vmem:[%s4 + $0x68] sm:$0xff]
          %v327 = vld [vmem:[%s4 + $0x70] sm:$0xff]
          %v328 = vld [vmem:[%s4 + $0x78] sm:$0xff]
          %v329 = vld [vmem:[%s4 + $0x80] sm:$0xff]
          %v330 = vld [vmem:[%s4 + $0x88] sm:$0xff]
          %v331 = vld [vmem:[%s4 + $0x90] sm:$0xff]
          %v332 = vld [vmem:[%s4 + $0x98] sm:$0xff]
          %v333 = vld [vmem:[%s4 + $0xa0] sm:$0xff]
          %v334 = vld [vmem:[%s4 + $0xa8] sm:$0xff]
          %v335 = vld [vmem:[%s4 + $0xb0] sm:$0xff]
          %v336 = vld [vmem:[%s4 + $0xb8] sm:$0xff]
          %v337 = vld [vmem:[%s4 + $0xc0] sm:$0xff]
          %v338 = vld [vmem:[%s4 + $0xc8] sm:$0xff]
          %v339 = vld [vmem:[%s4 + $0xd0] sm:$0xff]
          %v340 = vld [vmem:[%s4 + $0xd8] sm:$0xff]
          %v341 = vld [vmem:[%s4 + $0xe0] sm:$0xff]
          %v342 = vld [vmem:[%s4 + $0xe8] sm:$0xff]
          %v343 = vld [vmem:[%s4 + $0xf0] sm:$0xff]
          %v344 = vld [vmem:[%s4 + $0xf8] sm:$0xff]
          %v345 = vld [vmem:[%s5] sm:$0x3]
          %v347 = vlaneseq
          %v348 = vshrl.u32 %v347, 7
          %v349 = vsub.s32 0, %v348
          %v350 = vrot.slane %v345, %v349
          %v351 = vlaneseq
          %v352 = vshrl.u32 %v351, 7
          %v353 = vsub.s32 1, %v352
          %v354 = vrot.slane %v345, %v353
          %357 = vmatprep.subr.mxu0 %v344
          %358 = vmatpush1.msra.mxu0 %v343
          %359 = vmatprep.subr.mxu0 %v342
          %360 = vmatpush1.msra.mxu0 %v341
          %361 = vmatprep.subr.mxu0 %v340
          %362 = vmatpush1.msra.mxu0 %v339
          %363 = vmatprep.subr.mxu0 %v338
          %364 = vmatpush1.msra.mxu0 %v337
          %365 = vmatprep.subr.mxu0 %v336
          %366 = vmatpush1.msra.mxu0 %v335
          %367 = vmatprep.subr.mxu0 %v334
          %368 = vmatpush1.msra.mxu0 %v333
          %369 = vmatprep.subr.mxu0 %v332
          %370 = vmatpush1.msra.mxu0 %v331
          %371 = vmatprep.subr.mxu0 %v330
          %372 = vmatpush1.msra.mxu0 %v329
          %373 = vmatprep.subr.mxu0 %v328
          %374 = vmatpush1.msra.mxu0 %v327
          %375 = vmatprep.subr.mxu0 %v326
          %376 = vmatpush1.msra.mxu0 %v325
          %377 = vmatprep.subr.mxu0 %v324
          %378 = vmatpush1.msra.mxu0 %v323
          %379 = vmatprep.subr.mxu0 %v322
          %380 = vmatpush1.msra.mxu0 %v321
          %381 = vmatprep.subr.mxu0 %v320
          %382 = vmatpush1.msra.mxu0 %v319
          %383 = vmatprep.subr.mxu0 %v318
          %384 = vmatpush1.msra.mxu0 %v317
          %385 = vmatprep.subr.mxu0 %v316
          %386 = vmatpush1.msra.mxu0 %v315
          %387 = vmatprep.subr.mxu0 %v314
          %388 = vmatpush1.msra.mxu0 %v313
          %389 = vmatprep.subr.mxu0 0.0
          %390 = vmatpush2.msra.mxu0 0.0
          %391 = vmatprep.subr.mxu0 0.0
          %392 = vmatpush2.msra.mxu0 0.0
          %393 = vmatprep.subr.mxu0 0.0
          %394 = vmatpush2.msra.mxu0 0.0
          %395 = vmatprep.subr.mxu0 0.0
          %396 = vmatpush2.msra.mxu0 0.0
          %397 = vmatprep.subr.mxu0 0.0
          %398 = vmatpush2.msra.mxu0 0.0
          %399 = vmatprep.subr.mxu0 0.0
          %400 = vmatpush2.msra.mxu0 0.0
          %401 = vmatprep.subr.mxu0 0.0
          %402 = vmatpush2.msra.mxu0 0.0
          %403 = vmatprep.subr.mxu0 0.0
          %404 = vmatpush2.msra.mxu0 0.0
          %405 = vmatprep.subr.mxu0 0.0
          %406 = vmatpush2.msra.mxu0 0.0
          %407 = vmatprep.subr.mxu0 0.0
          %408 = vmatpush2.msra.mxu0 0.0
          %409 = vmatprep.subr.mxu0 0.0
          %410 = vmatpush2.msra.mxu0 0.0
          %411 = vmatprep.subr.mxu0 0.0
          %412 = vmatpush2.msra.mxu0 0.0
          %413 = vmatprep.subr.mxu0 0.0
          %414 = vmatpush2.msra.mxu0 0.0
          %415 = vmatprep.subr.mxu0 0.0
          %416 = vmatpush2.msra.mxu0 0.0
          %417 = vmatprep.subr.mxu0 0.0
          %418 = vmatpush2.msra.mxu0 0.0
          %419 = vmatprep.subr.mxu0 0.0
          %420 = vmatpush2.msra.mxu0 0.0
          %421 = vmatprep.mubr.f32.mxu0 0.0
          %422 = vmatmul.mubr.f32.gmra.mxu0 %v312
          %v423 = vpop.f32.mrf.mxu0
          %v424 = vadd.f32 %v350, %v423
          %v425 = vpop.f32.mrf.mxu0
          %v426 = vadd.f32 %v354, %v425
          %427 = vdwg.mxu0
          %s428 = scalar_lea.vmem [#allocation3], %s307
          %429 = vst [vmem:[%s428] sm:$0xff] %v424
          %s430 = scalar_lea.vmem [#allocation4], %s307
          %431 = vst [vmem:[%s430] sm:$0xff] %v426
        $region48: #{self_attention.1} parent=43 // pred_fallthru
          _
        %p432 = scmp.eq.s32.totalorder %s27, 0
        // Predicated region
        $region49: #{self_attention.1} parent=43 // pred_check
          %p433 = pneg %p432
        $region50: #{self_attention.1} parent=43 // pred_check_branch
          %435 = sbr.rel (%p433) target = $region52
        $region51: #{self_attention.1} parent=43 // pred_region
          %v436 = vld [vmem:[%s299] sm:$0xff]
          %v437 = vld [vmem:[%s2] sm:$0xff]
          %v438 = vld [vmem:[%s2 + $0x8] sm:$0xff]
          %v439 = vld [vmem:[%s2 + $0x10] sm:$0xff]
          %v440 = vld [vmem:[%s2 + $0x18] sm:$0xff]
          %v441 = vld [vmem:[%s2 + $0x20] sm:$0xff]
          %v442 = vld [vmem:[%s2 + $0x28] sm:$0xff]
          %v443 = vld [vmem:[%s2 + $0x30] sm:$0xff]
          %v444 = vld [vmem:[%s2 + $0x38] sm:$0xff]
          %v445 = vld [vmem:[%s2 + $0x40] sm:$0xff]
          %v446 = vld [vmem:[%s2 + $0x48] sm:$0xff]
          %v447 = vld [vmem:[%s2 + $0x50] sm:$0xff]
          %v448 = vld [vmem:[%s2 + $0x58] sm:$0xff]
          %v449 = vld [vmem:[%s2 + $0x60] sm:$0xff]
          %v450 = vld [vmem:[%s2 + $0x68] sm:$0xff]
          %v451 = vld [vmem:[%s2 + $0x70] sm:$0xff]
          %v452 = vld [vmem:[%s2 + $0x78] sm:$0xff]
          %v453 = vld [vmem:[%s3] sm:$0x1]
          %v455 = vlaneseq
          %v456 = vshrl.u32 %v455, 7
          %v457 = vsub.s32 0, %v456
          %v458 = vrot.slane %v453, %v457
          %460 = vmatprep.subr.mxu0 0.0
          %461 = vmatpush1.msra.mxu0 %v452
          %462 = vmatprep.subr.mxu0 0.0
          %463 = vmatpush1.msra.mxu0 %v451
          %464 = vmatprep.subr.mxu0 0.0
          %465 = vmatpush1.msra.mxu0 %v450
          %466 = vmatprep.subr.mxu0 0.0
          %467 = vmatpush1.msra.mxu0 %v449
          %468 = vmatprep.subr.mxu0 0.0
          %469 = vmatpush1.msra.mxu0 %v448
          %470 = vmatprep.subr.mxu0 0.0
          %471 = vmatpush1.msra.mxu0 %v447
          %472 = vmatprep.subr.mxu0 0.0
          %473 = vmatpush1.msra.mxu0 %v446
          %474 = vmatprep.subr.mxu0 0.0
          %475 = vmatpush1.msra.mxu0 %v445
          %476 = vmatprep.subr.mxu0 0.0
          %477 = vmatpush1.msra.mxu0 %v444
          %478 = vmatprep.subr.mxu0 0.0
          %479 = vmatpush1.msra.mxu0 %v443
          %480 = vmatprep.subr.mxu0 0.0
          %481 = vmatpush1.msra.mxu0 %v442
          %482 = vmatprep.subr.mxu0 0.0
          %483 = vmatpush1.msra.mxu0 %v441
          %484 = vmatprep.subr.mxu0 0.0
          %485 = vmatpush1.msra.mxu0 %v440
          %486 = vmatprep.subr.mxu0 0.0
          %487 = vmatpush1.msra.mxu0 %v439
          %488 = vmatprep.subr.mxu0 0.0
          %489 = vmatpush1.msra.mxu0 %v438
          %490 = vmatprep.subr.mxu0 0.0
          %491 = vmatpush1.msra.mxu0 %v437
          %492 = vmatprep.subr.mxu0 0.0
          %493 = vmatpush2.msra.mxu0 0.0
          %494 = vmatprep.subr.mxu0 0.0
          %495 = vmatpush2.msra.mxu0 0.0
          %496 = vmatprep.subr.mxu0 0.0
          %497 = vmatpush2.msra.mxu0 0.0
          %498 = vmatprep.subr.mxu0 0.0
          %499 = vmatpush2.msra.mxu0 0.0
          %500 = vmatprep.subr.mxu0 0.0
          %501 = vmatpush2.msra.mxu0 0.0
          %502 = vmatprep.subr.mxu0 0.0
          %503 = vmatpush2.msra.mxu0 0.0
          %504 = vmatprep.subr.mxu0 0.0
          %505 = vmatpush2.msra.mxu0 0.0
          %506 = vmatprep.subr.mxu0 0.0
          %507 = vmatpush2.msra.mxu0 0.0
          %508 = vmatprep.subr.mxu0 0.0
          %509 = vmatpush2.msra.mxu0 0.0
          %510 = vmatprep.subr.mxu0 0.0
          %511 = vmatpush2.msra.mxu0 0.0
          %512 = vmatprep.subr.mxu0 0.0
          %513 = vmatpush2.msra.mxu0 0.0
          %514 = vmatprep.subr.mxu0 0.0
          %515 = vmatpush2.msra.mxu0 0.0
          %516 = vmatprep.subr.mxu0 0.0
          %517 = vmatpush2.msra.mxu0 0.0
          %518 = vmatprep.subr.mxu0 0.0
          %519 = vmatpush2.msra.mxu0 0.0
          %520 = vmatprep.subr.mxu0 0.0
          %521 = vmatpush2.msra.mxu0 0.0
          %522 = vmatprep.subr.mxu0 0.0
          %523 = vmatpush2.msra.mxu0 0.0
          %524 = vmatprep.mubr.f32.mxu0 0.0
          %525 = vmatmul.mubr.f32.gmra.mxu0 %v436
          %v526 = vpop.f32.mrf.mxu0
          %v527 = vadd.f32 %v458, %v526
          %v528 = vpop.f32.mrf.mxu0
          %529 = vdwg.mxu0
          %530 = vst [vmem:[#allocation2] sm:$0xff] %v527
          %vm531 = vcmask 7168
          %532 = vst.msk [vmem:[#allocation5] sm:$0xff] %vm531, -inf
          %533 = vst.msk [vmem:[#allocation6] sm:$0xff] %vm531, 0.0
          %534 = vst [vmem:[#allocation7] sm:$0xff] 0.0
        $region52: #{self_attention.1} parent=43 // pred_fallthru
          _
        %s535 = scalar_lea.vmem [#allocation3], %s307
        %v536 = vld [vmem:[%s535] sm:$0xff]
        %s537 = scalar_lea.vmem [#allocation4], %s307
        %v538 = vld [vmem:[%s537] sm:$0xff]
        %v539 = vld [vmem:[#allocation2] sm:$0xff]
        %540 = vmatprep.subr.mxu0 0.0
        %541 = vmatpush1.xpose.msra.mxu0 0.0
        %542 = vmatprep.subr.mxu0 0.0
        %543 = vmatpush1.xpose.msra.mxu0 0.0
        %544 = vmatprep.subr.mxu0 0.0
        %545 = vmatpush1.xpose.msra.mxu0 0.0
        %546 = vmatprep.subr.mxu0 0.0
        %547 = vmatpush1.xpose.msra.mxu0 0.0
        %548 = vmatprep.subr.mxu0 0.0
        %549 = vmatpush1.xpose.msra.mxu0 0.0
        %550 = vmatprep.subr.mxu0 0.0
        %551 = vmatpush1.xpose.msra.mxu0 0.0
        %552 = vmatprep.subr.mxu0 0.0
        %553 = vmatpush1.xpose.msra.mxu0 0.0
        %554 = vmatprep.subr.mxu0 0.0
        %555 = vmatpush1.xpose.msra.mxu0 0.0
        %556 = vmatprep.subr.mxu0 0.0
        %557 = vmatpush1.xpose.msra.mxu0 0.0
        %558 = vmatprep.subr.mxu0 0.0
        %559 = vmatpush1.xpose.msra.mxu0 0.0
        %560 = vmatprep.subr.mxu0 0.0
        %561 = vmatpush1.xpose.msra.mxu0 0.0
        %562 = vmatprep.subr.mxu0 0.0
        %563 = vmatpush1.xpose.msra.mxu0 0.0
        %564 = vmatprep.subr.mxu0 0.0
        %565 = vmatpush1.xpose.msra.mxu0 0.0
        %566 = vmatprep.subr.mxu0 0.0
        %567 = vmatpush1.xpose.msra.mxu0 0.0
        %568 = vmatprep.subr.mxu0 0.0
        %569 = vmatpush1.xpose.msra.mxu0 0.0
        %570 = vmatprep.subr.mxu0 0.0
        %571 = vmatpush1.xpose.msra.mxu0 %v536
        %572 = vmatprep.subr.mxu0 0.0
        %573 = vmatpush2.xpose.msra.mxu0 0.0
        %574 = vmatprep.subr.mxu0 0.0
        %575 = vmatpush2.xpose.msra.mxu0 0.0
        %576 = vmatprep.subr.mxu0 0.0
        %577 = vmatpush2.xpose.msra.mxu0 0.0
        %578 = vmatprep.subr.mxu0 0.0
        %579 = vmatpush2.xpose.msra.mxu0 0.0
        %580 = vmatprep.subr.mxu0 0.0
        %581 = vmatpush2.xpose.msra.mxu0 0.0
        %582 = vmatprep.subr.mxu0 0.0
        %583 = vmatpush2.xpose.msra.mxu0 0.0
        %584 = vmatprep.subr.mxu0 0.0
        %585 = vmatpush2.xpose.msra.mxu0 0.0
        %586 = vmatprep.subr.mxu0 0.0
        %587 = vmatpush2.xpose.msra.mxu0 0.0
        %588 = vmatprep.subr.mxu0 0.0
        %589 = vmatpush2.xpose.msra.mxu0 0.0
        %590 = vmatprep.subr.mxu0 0.0
        %591 = vmatpush2.xpose.msra.mxu0 0.0
        %592 = vmatprep.subr.mxu0 0.0
        %593 = vmatpush2.xpose.msra.mxu0 0.0
        %594 = vmatprep.subr.mxu0 0.0
        %595 = vmatpush2.xpose.msra.mxu0 0.0
        %596 = vmatprep.subr.mxu0 0.0
        %597 = vmatpush2.xpose.msra.mxu0 0.0
        %598 = vmatprep.subr.mxu0 0.0
        %599 = vmatpush2.xpose.msra.mxu0 0.0
        %600 = vmatprep.subr.mxu0 0.0
        %601 = vmatpush2.xpose.msra.mxu0 0.0
        %602 = vmatprep.subr.mxu0 0.0
        %603 = vmatpush2.xpose.msra.mxu0 0.0
        %604 = vmatprep.mubr.f32.mxu0 0.0
        %605 = vmatmul.mubr.f32.gmra.mxu0 %v539
        %v606 = vpop.f32.mrf.mxu0
        %v607 = vadd.f32 0.0, %v606
        %v608 = vpop.f32.mrf.mxu0
        %609 = vdwg.mxu0
        %v610 = vld [vmem:[#allocation5] sm:$0xff]
        %vm611 = vcmask 64512
        %v612 = vsel %vm611, %v607, -inf
        %613 = vmax.xlane.f32.xlu0 %v612
        %v614 = vpop.xlane.xlu0 %613
        %v615 = vmax.f32 %v610, %v614
        %v616 = vsub.f32 %v610, %v615
        %v617 = vmul.f32 %v616, 1.442695
        %v618 = vpow.pop %v617
        %620 = vset.pattern.permute.xlu0 0
        %621 = vperm.xlu0 %620, %v615
        %v622 = vpop.permute.xlu0 %621
        %v624 = vsub.f32 %v607, %v622
        %v625 = vmul.f32 %v624, 1.442695
        %v626 = vpow.pop %v625
        %v627 = vld [vmem:[#allocation6] sm:$0xff]
        %v628 = vmul.f32 %v618, %v627
        %v629 = vsel %vm611, %v626, 0.0
        %630 = vadd.xlane.f32.xlu0 %v629
        %v631 = vpop.xlane.xlu0 %630
        %v632 = vadd.f32 %v628, %v631
        %vm633 = vcmask 7168
        %634 = vst.msk [vmem:[#allocation6] sm:$0xff] %vm633, %v632
        %v635 = vld [vmem:[#allocation7] sm:$0xff]
        %637 = vset.pattern.permute.xlu0 0
        %638 = vperm.xlu0 %637, %v618
        %v639 = vpop.permute.xlu0 %638
        %v641 = vmul.f32 %v639, %v635
        %v643 = vsel %vm611, %v626, 0
        %645 = vmatprep.subr.mxu0 0.0
        %646 = vmatpush1.msra.mxu0 0.0
        %647 = vmatprep.subr.mxu0 0.0
        %648 = vmatpush1.msra.mxu0 0.0
        %649 = vmatprep.subr.mxu0 0.0
        %650 = vmatpush1.msra.mxu0 0.0
        %651 = vmatprep.subr.mxu0 0.0
        %652 = vmatpush1.msra.mxu0 0.0
        %653 = vmatprep.subr.mxu0 0.0
        %654 = vmatpush1.msra.mxu0 0.0
        %655 = vmatprep.subr.mxu0 0.0
        %656 = vmatpush1.msra.mxu0 0.0
        %657 = vmatprep.subr.mxu0 0.0
        %658 = vmatpush1.msra.mxu0 0.0
        %659 = vmatprep.subr.mxu0 0.0
        %660 = vmatpush1.msra.mxu0 0.0
        %661 = vmatprep.subr.mxu0 0.0
        %662 = vmatpush1.msra.mxu0 0.0
        %663 = vmatprep.subr.mxu0 0.0
        %664 = vmatpush1.msra.mxu0 0.0
        %665 = vmatprep.subr.mxu0 0.0
        %666 = vmatpush1.msra.mxu0 0.0
        %667 = vmatprep.subr.mxu0 0.0
        %668 = vmatpush1.msra.mxu0 0.0
        %669 = vmatprep.subr.mxu0 0.0
        %670 = vmatpush1.msra.mxu0 0.0
        %671 = vmatprep.subr.mxu0 0.0
        %672 = vmatpush1.msra.mxu0 0.0
        %673 = vmatprep.subr.mxu0 0.0
        %674 = vmatpush1.msra.mxu0 0.0
        %675 = vmatprep.subr.mxu0 0.0
        %676 = vmatpush1.msra.mxu0 %v538
        %677 = vmatprep.subr.mxu0 0.0
        %678 = vmatpush2.msra.mxu0 0.0
        %679 = vmatprep.subr.mxu0 0.0
        %680 = vmatpush2.msra.mxu0 0.0
        %681 = vmatprep.subr.mxu0 0.0
        %682 = vmatpush2.msra.mxu0 0.0
        %683 = vmatprep.subr.mxu0 0.0
        %684 = vmatpush2.msra.mxu0 0.0
        %685 = vmatprep.subr.mxu0 0.0
        %686 = vmatpush2.msra.mxu0 0.0
        %687 = vmatprep.subr.mxu0 0.0
        %688 = vmatpush2.msra.mxu0 0.0
        %689 = vmatprep.subr.mxu0 0.0
        %690 = vmatpush2.msra.mxu0 0.0
        %691 = vmatprep.subr.mxu0 0.0
        %692 = vmatpush2.msra.mxu0 0.0
        %693 = vmatprep.subr.mxu0 0.0
        %694 = vmatpush2.msra.mxu0 0.0
        %695 = vmatprep.subr.mxu0 0.0
        %696 = vmatpush2.msra.mxu0 0.0
        %697 = vmatprep.subr.mxu0 0.0
        %698 = vmatpush2.msra.mxu0 0.0
        %699 = vmatprep.subr.mxu0 0.0
        %700 = vmatpush2.msra.mxu0 0.0
        %701 = vmatprep.subr.mxu0 0.0
        %702 = vmatpush2.msra.mxu0 0.0
        %703 = vmatprep.subr.mxu0 0.0
        %704 = vmatpush2.msra.mxu0 0.0
        %705 = vmatprep.subr.mxu0 0.0
        %706 = vmatpush2.msra.mxu0 0.0
        %707 = vmatprep.subr.mxu0 0.0
        %708 = vmatpush2.msra.mxu0 0.0
        %709 = vmatprep.mubr.f32.mxu0 0.0
        %710 = vmatmul.mubr.f32.gmra.mxu0 %v643
        %v711 = vpop.f32.mrf.mxu0
        %v712 = vadd.f32 0.0, %v711
        %v713 = vpop.f32.mrf.mxu0
        %714 = vdwg.mxu0
        %v715 = vadd.f32 %v641, %v712
        %716 = vst [vmem:[#allocation7] sm:$0xff] %v715
        %717 = vst.msk [vmem:[#allocation5] sm:$0xff] %vm633, %v615
        // Predicated region
        $region53: #{self_attention.1} parent=43 // pred_check
          %p718 = pneg %p432
        $region54: #{self_attention.1} parent=43 // pred_check_branch
          %720 = sbr.rel (%p718) target = $region56
        $region55: #{self_attention.1} parent=43 // pred_region
          %v721 = vld [vmem:[#allocation7] sm:$0xff]
          %v722 = vld [vmem:[#allocation6] sm:$0xff]
          %v723 = vrcp.pop %v722
          %725 = vset.pattern.permute.xlu0 0
          %726 = vperm.xlu0 %725, %v723
          %v727 = vpop.permute.xlu0 %726
          %v729 = vmul.f32 %v721, %v727
          %730 = vst [vmem:[%s292] sm:$0xff] %v729
        $region56: #{self_attention.1} parent=43 // pred_fallthru
          _
        %s731 = sand.u32 %s189, 1
        %s732 = scalar_lea.sflag [#allocation9], %s731
        %s733 = sand.u32 %s189, 1
        %s734 = smul.addr %s733, 8
        %s735 = scalar_lea.vmem [#allocation8], %s734
        // Predicated region
        $region57: #{self_attention.1} parent=43 // pred_check
          %p736 = pneg %p199
        $region58: #{self_attention.1} parent=43 // pred_check_branch
          %738 = sbr.rel (%p736) target = $region60
        $region59: #{self_attention.1} parent=43 // pred_region
          %s740 = ssub.s32 128, 128
          %741 = vsyncadd %s732, %s740
          %s742 = sadd.s32 %s26, %s25
          %s743 = smul.addr %s742, 128
          %s744 = scalar_lea.hbm %s6, %s743
          %s746 = sshll.u32 %s735, 4
          %s747 = int_to_ptr.vmem [resolvable:$true] %s746
          %749 = dma.vmem_to_hbm [thread:$0]  %s747, 128, %s744, %s732
        $region60: #{self_attention.1} parent=43 // pred_fallthru
          _
      $region44: #{self_attention.1} parent=5 // pred_fallthru
        _
      %p750 = scmp.le.s32.totalorder 2, %s15
      // Predicated region
      $region61: #{self_attention.1} parent=5 // pred_check
        %p751 = pneg %p750
      $region62: #{self_attention.1} parent=5 // pred_check_branch
        %753 = sbr.rel (%p751) target = $region64
      $region63: #{self_attention.1} parent=5 // pred_region
        %s754 = ssub.s32 %s15, 2
        // Predicated region
        $region65: #{self_attention.1} parent=63 // pred_check
          %p755 = pneg %p205
        $region66: #{self_attention.1} parent=63 // pred_check_branch
          %757 = sbr.rel (%p755) target = $region68
        $region67: #{self_attention.1} parent=63 // pred_region
          %s758 = sand.u32 %s190, 1
          %s759 = scalar_lea.sflag [#allocation9], %s758
          %s760 = sand.u32 %s190, 1
          %s761 = smul.addr %s760, 8
          %s762 = scalar_lea.vmem [#allocation8], %s761
          %763 = dma.done %s759, 128
        $region68: #{self_attention.1} parent=63 // pred_fallthru
          _
      $region64: #{self_attention.1} parent=5 // pred_fallthru
        _
    $region6: #{self_attention.1} parent=1 // loop_footer
      %s19 = sadd.s32 1, %s15
    $region7: #{self_attention.1} parent=1 // loop_footer_branch
      %14 = sbr.rel target = $region3
    $region8: #{self_attention.1} parent=1 // loop_exit
      _
    %764 = vsyncpa [#allocation9], 1
    %s765 = scalar_lea.sflag [#allocation9], 1
    %766 = vsyncpa %s765, 1

</llo_original>
